<compile_context>
chip_gen: v5e
topology: v5e:2x2
jax: 0.10.0
libtpu: 0.0.40
codegen_flags: <defaults>
</compile_context>

<pallas_src>
import functools
import re

import numpy as np
import jax
import jax.numpy as jnp
from jax.experimental import pallas as pl
from jax.experimental.pallas import tpu as pltpu

EPS = 1e-5          # torch.nn.BatchNorm1d default eps
LANE = 128          # TPU lane width
ROW_ALIGN = 16      # row-padding quantum (covers the (16,128) bf16 tile)


def _round_up(n, m):
    return ((n + m - 1) // m) * m


def _itemsize(dt):
    return np.dtype(dt).itemsize


def _chip_generation():
    """Best-effort TPU generation (5, 6, 7, ...) parsed from the device kind."""
    try:
        kind = jax.devices()[0].device_kind.lower()
        m = re.search(r"v(\d+)", kind)
        return int(m.group(1)) if m else 0
    except Exception:
        return 0


def _vmem_budget_bytes():
    """~80% of physical VMEM; leaves headroom for compiler scratch / IO buffers."""
    try:
        cap = int(pltpu.get_tpu_info().vmem_capacity_bytes)
    except Exception:
        cap = 64 << 20          # conservative fallback = v7x per-TensorCore VMEM
    return int(cap * 0.8)


def _cap(estimate, budget):
    return int(min(max(int(estimate), 4 << 20), budget))


def _stack_params(params, d_pad, w_dtype):
    """Stack per-layer (W, gamma, beta, alpha) into lane-dense, layer-indexed tensors."""
    ws, gs, bs, aa = [], [], [], []
    for (w, g, b, a) in params:
        di, do = w.shape
        ws.append(jnp.pad(w.astype(jnp.float32), ((0, d_pad - di), (0, d_pad - do))))
        gs.append(jnp.pad(g.astype(jnp.float32).reshape(1, -1),
                          ((0, 0), (0, d_pad - do)), constant_values=1.0))
        bs.append(jnp.pad(b.astype(jnp.float32).reshape(1, -1),
                          ((0, 0), (0, d_pad - do))))
        aa.append(a.astype(jnp.float32).reshape(-1)[:1])
    w_all = jnp.stack(ws).astype(w_dtype)      # (L, Dp, Dp)
    g_all = jnp.stack(gs)                      # (L, 1, Dp) f32
    b_all = jnp.stack(bs)                      # (L, 1, Dp) f32
    a_all = jnp.concatenate(aa)                # (L,)      f32 (SMEM scalars)
    return w_all, g_all, b_all, a_all


# --------------------------------------------------------------------------------------------------
# Path A: whole-batch-resident fused kernel (all layers in one pallas_call, no HBM activation spill).
# --------------------------------------------------------------------------------------------------
def _make_fused_kernel(num_layers, n_valid, mm_dtype, act_dtype):
    def kernel(x_ref, w_ref, g_ref, b_ref, a_ref, o_ref):
        n_pad = x_ref.shape[0]
        x = x_ref[...]                                                        # (Np, Dp) f32
        # Row-validity mask, replicated over 8 sublanes so the stats reductions are plain
        # (8,Np)@(Np,Dp) MXU matmuls (row 0 of the result is the masked column sum).
        valid8 = (jax.lax.broadcasted_iota(jnp.int32, (8, n_pad), 1)
                  < n_valid).astype(jnp.float32)
        inv_n = 1.0 / float(n_valid)
        z = x.astype(act_dtype)
        for l in range(num_layers):
            h = jnp.dot(z.astype(mm_dtype), w_ref[l],
                        preferred_element_type=jnp.float32)                   # MXU, (Np, Dp) f32
            # Exact two-pass batch statistics (biased var), reductions on the MXU.
            mean = jnp.dot(valid8, h, preferred_element_type=jnp.float32)[0:1] * inv_n
            c = h - mean
            var = jnp.dot(valid8, c * c, preferred_element_type=jnp.float32)[0:1] * inv_n
            scale = g_ref[l] * jax.lax.rsqrt(var + EPS)                       # (1, Dp) f32
            shift = b_ref[l] - mean * scale
            # BN-apply + PReLU in act_dtype (bf16 on v6e/v7x, f32 on v5e).
            y = h.astype(act_dtype) * scale.astype(act_dtype) + shift.astype(act_dtype)
            a = a_ref[l].astype(act_dtype)                                    # PReLU slope (SMEM)
            z = jnp.where(y >= 0, y, a * y)
        o_ref[...] = z.astype(jnp.float32) + x                                # residual
    return kernel


# --------------------------------------------------------------------------------------------------
# Path B: N-tiled grid.  Per layer: phase 1 = matmul + cross-tile BN partial stats (Welford/Chan),
#                                   phase 2 = BN-apply + PReLU (+ residual), "parallel" grid axis.
# --------------------------------------------------------------------------------------------------
def _make_stats_kernel(n_valid, n_tile, mm_dtype):
    def kernel(z_ref, w_ref, g_ref, b_ref, h_ref, ss_ref, mean_acc, m2_acc):
        i = pl.program_id(0)
        # fc on the MXU (bf16 inputs, f32 accumulate).
        h = jnp.dot(z_ref[...].astype(mm_dtype), w_ref[0],
                    preferred_element_type=jnp.float32)                       # (tn, Dp) f32
        h_ref[...] = h.astype(h_ref.dtype)

        # Row-validity mask for this tile (global rows >= n_valid are padding), replicated over
        # 8 sublanes so the masked column sums are MXU matmuls, not XLU sublane reduces.
        valid8 = (jax.lax.broadcasted_iota(jnp.int32, (8, n_tile), 1) + i * n_tile
                  < n_valid).astype(jnp.float32)
        m_i = jnp.minimum(n_tile, n_valid - i * n_tile).astype(jnp.float32)   # rows in this tile

        # Per-tile two-pass statistics (robust), then Chan/Welford combine across tiles.
        s1 = jnp.dot(valid8, h, preferred_element_type=jnp.float32)[0:1]      # (1, Dp)
        tmean = s1 / m_i
        c = h - tmean
        tm2 = jnp.dot(valid8, c * c, preferred_element_type=jnp.float32)[0:1]

        @pl.when(i == 0)
        def _():
            mean_acc[...] = tmean
            m2_acc[...] = tm2

        @pl.when(i > 0)
        def _():
            cnt = jnp.minimum(i * n_tile, n_valid).astype(jnp.float32)        # rows seen so far
            tot = cnt + m_i
            delta = tmean - mean_acc[...]
            mean_acc[...] = mean_acc[...] + delta * (m_i / tot)
            m2_acc[...] = m2_acc[...] + tm2 + (delta * delta) * (cnt * m_i / tot)

        @pl.when(i == pl.num_programs(0) - 1)
        def _():
            var = m2_acc[...] * (1.0 / float(n_valid))                        # biased batch var
            scale = g_ref[0] * jax.lax.rsqrt(var + EPS)
            shift = b_ref[0] - mean_acc[...] * scale
            ss_ref[0] = scale
            ss_ref[1] = shift

    return kernel


def _make_apply_kernel(layer, act_dtype, with_residual):
    def kernel(*refs):
        if with_residual:
            h_ref, ss_ref, a_ref, x_ref, o_ref = refs
        else:
            h_ref, ss_ref, a_ref, o_ref = refs
        scale = ss_ref[0].astype(act_dtype)                                   # (1, Dp)
        shift = ss_ref[1].astype(act_dtype)
        a = a_ref[layer].astype(act_dtype)                                    # PReLU slope (SMEM)
        y = h_ref[...].astype(act_dtype) * scale + shift
        z = jnp.where(y >= 0, y, a * y)
        if with_residual:
            o_ref[...] = z.astype(jnp.float32) + x_ref[...]                   # residual
        else:
            o_ref[...] = z.astype(o_ref.dtype)
    return kernel


# --------------------------------------------------------------------------------------------------
# Wrapper
# --------------------------------------------------------------------------------------------------
@functools.partial(jax.jit, static_argnames=("matmul_dtype", "act_dtype", "n_tile", "force_grid"))
def residual_nn(x, params, *, matmul_dtype=None, act_dtype=None, n_tile=None, force_grid=False):
    """params: list of (W, gamma, beta, alpha) per layer; W is (D_in_i, D_out_i) (= torch weight.T)."""
    n, d_in = x.shape
    num_layers = len(params)

    gen = _chip_generation()
    if matmul_dtype is None:
        matmul_dtype = jnp.bfloat16                           # MXU is bf16-native on v5e/v6e/v7x
    if act_dtype is None:
        act_dtype = jnp.bfloat16 if gen >= 6 else jnp.float32  # no bf16 VALU on v5e / unknown
    budget = _vmem_budget_bytes()

    dims = [d_in] + [p[0].shape[1] for p in params]
    d_pad = _round_up(max(dims), LANE)
    w_all, g_all, b_all, a_all = _stack_params(params, d_pad, matmul_dtype)

    act_b = _itemsize(act_dtype)
    mm_b = _itemsize(matmul_dtype)
    param_bytes = w_all.size * mm_b + (g_all.size + b_all.size + a_all.size) * 4

    vmem_spec = pl.BlockSpec(memory_space=pltpu.MemorySpace.VMEM)
    smem_spec = pl.BlockSpec(memory_space=pltpu.MemorySpace.SMEM)

    # ---------------- path selection ----------------
    n_pad_fused = _round_up(max(n, ROW_ALIGN), ROW_ALIGN)
    # per-row live bytes in the fused kernel: x(in) + out + z(act) + ~4 f32 temporaries
    fused_est = param_bytes + n_pad_fused * d_pad * (4 + 4 + act_b + 4 * 4) + (2 << 20)
    use_grid = force_grid or (n_tile is not None) or (fused_est > int(0.6 * budget))

    if not use_grid:
        x_pad = jnp.pad(x.astype(jnp.float32), ((0, n_pad_fused - n), (0, d_pad - d_in)))
        out_pad = pl.pallas_call(
            _make_fused_kernel(num_layers, n, matmul_dtype, act_dtype),
            out_shape=jax.ShapeDtypeStruct((n_pad_fused, d_pad), jnp.float32),
            in_specs=[vmem_spec, vmem_spec, vmem_spec, vmem_spec, smem_spec],
            out_specs=vmem_spec,
            compiler_params=pltpu.CompilerParams(vmem_limit_bytes=_cap(fused_est, budget)),
        )(x_pad, w_all, g_all, b_all, a_all)
        return out_pad[:n, :d_in].astype(x.dtype)

    # ---------------- gridded path ----------------
    if n_tile is None:
        # double-buffered z/h tiles + a few f32 temporaries per row; use ~half the budget
        per_row = (2 * 4 + 2 * act_b + 4 * 4) * d_pad
        n_tile = max(ROW_ALIGN, min(2048, (budget // 2) // per_row))
    n_tile = max(ROW_ALIGN, (min(int(n_tile), _round_up(n, ROW_ALIGN)) // ROW_ALIGN) * ROW_ALIGN)
    n_pad = _round_up(n, n_tile)
    num_tiles = n_pad // n_tile

    x_pad = jnp.pad(x.astype(jnp.float32), ((0, n_pad - n), (0, d_pad - d_in)))

    est_stats = (2 * d_pad * d_pad * mm_b + 16 * d_pad * 4
                 + 2 * n_tile * d_pad * (4 + act_b)
                 + 6 * n_tile * d_pad * 4 + (2 << 20))
    est_apply = (16 * d_pad * 4
                 + n_tile * d_pad * (2 * act_b + 2 * 4 + 2 * 4)
                 + 4 * n_tile * d_pad * 4 + (2 << 20))

    z = x_pad
    for l in range(num_layers):
        is_last = (l == num_layers - 1)

        # Phase 1: z @ W_l on the MXU + cross-tile BN partial stats -> (h, (scale, shift)).
        h, ss = pl.pallas_call(
            _make_stats_kernel(n, n_tile, matmul_dtype),
            grid=(num_tiles,),
            in_specs=[
                pl.BlockSpec((n_tile, d_pad), lambda i: (i, 0)),              # z tile
                pl.BlockSpec((1, d_pad, d_pad), lambda i, l=l: (l, 0, 0)),    # W_l (resident)
                pl.BlockSpec((1, 1, d_pad), lambda i, l=l: (l, 0, 0)),        # gamma_l
                pl.BlockSpec((1, 1, d_pad), lambda i, l=l: (l, 0, 0)),        # beta_l
            ],
            out_shape=(jax.ShapeDtypeStruct((n_pad, d_pad), act_dtype),       # h
                       jax.ShapeDtypeStruct((2, 1, d_pad), jnp.float32)),     # (scale, shift)
            out_specs=(pl.BlockSpec((n_tile, d_pad), lambda i: (i, 0)),
                       pl.BlockSpec((2, 1, d_pad), lambda i: (0, 0, 0))),
            scratch_shapes=[pltpu.VMEM((1, d_pad), jnp.float32),              # running mean
                            pltpu.VMEM((1, d_pad), jnp.float32)],             # running M2
            compiler_params=pltpu.CompilerParams(
                dimension_semantics=("arbitrary",),
                vmem_limit_bytes=_cap(est_stats, budget)),
        )(z, w_all, g_all, b_all)

        # Phase 2: BN-apply + PReLU (+ residual).  Independent tiles -> "parallel" (megacore on v7x).
        apply_in_specs = [
            pl.BlockSpec((n_tile, d_pad), lambda i: (i, 0)),                  # h tile
            pl.BlockSpec((2, 1, d_pad), lambda i: (0, 0, 0)),                 # scale/shift (resident)
            smem_spec,                                                        # PReLU slopes
        ]
        apply_args = [h, ss, a_all]
        if is_last:
            apply_in_specs.append(pl.BlockSpec((n_tile, d_pad), lambda i: (i, 0)))   # x for residual
            apply_args.append(x_pad)
        z = pl.pallas_call(
            _make_apply_kernel(l, act_dtype, is_last),
            grid=(num_tiles,),
            in_specs=apply_in_specs,
            out_shape=jax.ShapeDtypeStruct((n_pad, d_pad),
                                           jnp.float32 if is_last else act_dtype),
            out_specs=pl.BlockSpec((n_tile, d_pad), lambda i: (i, 0)),
            compiler_params=pltpu.CompilerParams(
                dimension_semantics=("parallel",),
                vmem_limit_bytes=_cap(est_apply, budget)),
        )(*apply_args)

    return z[:n, :d_in].astype(x.dtype)


# --------------------------------------------------------------------------------------------------
# Pure-JAX reference (training-mode BatchNorm1d, two-pass stats) and parameter construction.
# --------------------------------------------------------------------------------------------------
def reference(x, params):
    z = x
    for (w, g, b, a) in params:
        h = z @ w
        mean = jnp.mean(h, axis=0, keepdims=True)
        var = jnp.mean((h - mean) ** 2, axis=0, keepdims=True)
        y = (h - mean) / jnp.sqrt(var + EPS) * g + b
        z = jnp.where(y >= 0.0, y, a.reshape(()) * y)
    return z + x


def make_params(key, d_in, hidden, hidden_layers=2):
    """Deterministic, non-trivial parameter init.

    NOTE: the PyTorch __init__ fills fc weights with 0.0, making the forward degenerate
    (output == x).  Shapes are kept identical but a deterministic PRNG init is used so the kernel
    exercises real compute.  BN gamma=1, beta=0 and PReLU alpha=0.25 match PyTorch defaults.
    """
    params = []
    for i in range(hidden_layers + 1):
        di = d_in if i == 0 else hidden
        do = d_in if i == hidden_layers else hidden
        key, sub = jax.random.split(key)
        w = jax.random.normal(sub, (di, do), jnp.float32) * 0.1   # (in, out) = torch weight.T
        g = jnp.ones((1, do), jnp.float32)                        # BN weight
        b = jnp.zeros((1, do), jnp.float32)                       # BN bias
        a = jnp.full((1, 1), 0.25, jnp.float32)                   # PReLU default slope
        params.append((w, g, b, a))
    return params


if __name__ == "__main__":
    N, D_IN, HIDDEN = 8, 16, 32
    key = jax.random.PRNGKey(0)
    kx, kp = jax.random.split(key)
    x = jax.random.normal(kx, (N, D_IN), jnp.float32)
    params = make_params(kp, D_IN, HIDDEN, hidden_layers=2)
    ref = reference(x, params)

    # 1) fused whole-batch-resident path, all-f32 (tight check vs the f32 reference)
    out = jax.block_until_ready(
        residual_nn(x, params, matmul_dtype=jnp.float32, act_dtype=jnp.float32))
    assert out.shape == x.shape and out.dtype == x.dtype
    assert jnp.allclose(out, ref, atol=1e-4, rtol=1e-4), "fused f32 mismatch vs reference"

    # 2) fused path, default dtype policy (bf16 MXU; bf16 elementwise on v6e/v7x) -> loose tolerance
    out_bf = jax.block_until_ready(residual_nn(x, params))
    assert jnp.allclose(out_bf, ref, atol=0.15, rtol=0.15), "fused bf16 mismatch vs reference"

    # 3) N-tiled grid path (masked last tile + cross-tile Welford combine), all-f32 (tight check)
    N2 = 40
    x2 = jax.random.normal(jax.random.PRNGKey(1), (N2, D_IN), jnp.float32)
    ref2 = reference(x2, params)
    out2 = jax.block_until_ready(
        residual_nn(x2, params, matmul_dtype=jnp.float32, act_dtype=jnp.float32,
                    n_tile=16, force_grid=True))
    assert out2.shape == x2.shape
    assert jnp.allclose(out2, ref2, atol=1e-4, rtol=1e-4), "gridded f32 mismatch vs reference"

    # 4) N-tiled grid path, default dtype policy -> loose tolerance
    out2_bf = jax.block_until_ready(residual_nn(x2, params, n_tile=16, force_grid=True))
    assert jnp.allclose(out2_bf, ref2, atol=0.15, rtol=0.15), "gridded bf16 mismatch vs reference"

    print("KERNEL_OK")
</pallas_src>

<mosaic_0001>
module attributes {stable_mosaic.version = 11 : i64} {
  func.func @kernel(%arg0: memref<16x128xf32, #tpu.memory_space<vmem>>, %arg1: memref<3x128x128xf32, #tpu.memory_space<vmem>>, %arg2: memref<3x1x128xf32, #tpu.memory_space<vmem>>, %arg3: memref<3x1x128xf32, #tpu.memory_space<vmem>>, %arg4: memref<3xf32, #tpu.memory_space<smem>>, %arg5: memref<16x128xf32, #tpu.memory_space<vmem>>) attributes {dimension_semantics = [], scalar_prefetch = 0 : i64, scratch_operands = 0 : i64, tpu.core_type = #tpu.core_type<tc>} {
    %c0 = arith.constant 0 : index
    %c0_0 = arith.constant 0 : index
    %0 = vector.load %arg0[%c0, %c0_0] : memref<16x128xf32, #tpu.memory_space<vmem>>, vector<16x128xf32>
    %1 = tpu.iota {dimensions = array<i32: 1>} : vector<8x16xi32>
    %c8_i32 = arith.constant 8 : i32
    %2 = vector.broadcast %c8_i32 : i32 to vector<8x16xi32>
    %3 = arith.cmpi slt, %1, %2 : vector<8x16xi32>
    %4 = arith.extui %3 : vector<8x16xi1> to vector<8x16xi32>
    %5 = arith.sitofp %4 : vector<8x16xi32> to vector<8x16xf32>
    %c0_1 = arith.constant 0 : index
    %c0_2 = arith.constant 0 : index
    %c0_3 = arith.constant 0 : index
    %6 = vector.load %arg1[%c0_1, %c0_2, %c0_3] : memref<3x128x128xf32, #tpu.memory_space<vmem>>, vector<1x128x128xf32>
    %7 = vector.shape_cast %6 : vector<1x128x128xf32> to vector<128x128xf32>
    %cst = arith.constant dense<0.000000e+00> : vector<16x128xf32>
    %8 = tpu.matmul %0, %7, %cst {dimension_numbers = #tpu.dot_dimension_numbers<[1], [0], [0], [1], [0, 0, 1, 1], [], []>} : vector<16x128xf32>, vector<128x128xf32>, vector<16x128xf32> -> vector<16x128xf32>
    %cst_4 = arith.constant dense<0.000000e+00> : vector<8x128xf32>
    %9 = tpu.matmul %5, %8, %cst_4 {dimension_numbers = #tpu.dot_dimension_numbers<[1], [0], [0], [1], [0, 0, 1, 1], [], []>} : vector<8x16xf32>, vector<16x128xf32>, vector<8x128xf32> -> vector<8x128xf32>
    %10 = vector.extract_strided_slice %9 {offsets = [0, 0], sizes = [1, 128], strides = [1, 1]} : vector<8x128xf32> to vector<1x128xf32>
    %cst_5 = arith.constant 1.250000e-01 : f32
    %11 = vector.broadcast %cst_5 : f32 to vector<1x128xf32>
    %12 = arith.mulf %10, %11 : vector<1x128xf32>
    %13 = vector.broadcast %12 : vector<1x128xf32> to vector<16x128xf32>
    %14 = arith.subf %8, %13 : vector<16x128xf32>
    %15 = arith.mulf %14, %14 : vector<16x128xf32>
    %cst_6 = arith.constant dense<0.000000e+00> : vector<8x128xf32>
    %16 = tpu.matmul %5, %15, %cst_6 {dimension_numbers = #tpu.dot_dimension_numbers<[1], [0], [0], [1], [0, 0, 1, 1], [], []>} : vector<8x16xf32>, vector<16x128xf32>, vector<8x128xf32> -> vector<8x128xf32>
    %17 = vector.extract_strided_slice %16 {offsets = [0, 0], sizes = [1, 128], strides = [1, 1]} : vector<8x128xf32> to vector<1x128xf32>
    %cst_7 = arith.constant 1.250000e-01 : f32
    %18 = vector.broadcast %cst_7 : f32 to vector<1x128xf32>
    %19 = arith.mulf %17, %18 : vector<1x128xf32>
    %c0_8 = arith.constant 0 : index
    %c0_9 = arith.constant 0 : index
    %c0_10 = arith.constant 0 : index
    %20 = vector.load %arg2[%c0_8, %c0_9, %c0_10] : memref<3x1x128xf32, #tpu.memory_space<vmem>>, vector<1x1x128xf32>
    %21 = vector.shape_cast %20 : vector<1x1x128xf32> to vector<1x128xf32>
    %cst_11 = arith.constant 9.99999974E-6 : f32
    %22 = vector.broadcast %cst_11 : f32 to vector<1x128xf32>
    %23 = arith.addf %19, %22 : vector<1x128xf32>
    %24 = math.rsqrt %23 : vector<1x128xf32>
    %25 = arith.mulf %21, %24 : vector<1x128xf32>
    %c0_12 = arith.constant 0 : index
    %c0_13 = arith.constant 0 : index
    %c0_14 = arith.constant 0 : index
    %26 = vector.load %arg3[%c0_12, %c0_13, %c0_14] : memref<3x1x128xf32, #tpu.memory_space<vmem>>, vector<1x1x128xf32>
    %27 = vector.shape_cast %26 : vector<1x1x128xf32> to vector<1x128xf32>
    %28 = arith.mulf %12, %25 : vector<1x128xf32>
    %29 = arith.subf %27, %28 : vector<1x128xf32>
    %30 = vector.broadcast %25 : vector<1x128xf32> to vector<16x128xf32>
    %31 = arith.mulf %8, %30 : vector<16x128xf32>
    %32 = vector.broadcast %29 : vector<1x128xf32> to vector<16x128xf32>
    %33 = arith.addf %31, %32 : vector<16x128xf32>
    %c0_15 = arith.constant 0 : index
    %34 = memref.load %arg4[%c0_15] : memref<3xf32, #tpu.memory_space<smem>>
    %cst_16 = arith.constant 0.000000e+00 : f32
    %35 = vector.broadcast %cst_16 : f32 to vector<16x128xf32>
    %36 = arith.cmpf oge, %33, %35 : vector<16x128xf32>
    %37 = vector.broadcast %34 : f32 to vector<16x128xf32>
    %38 = arith.mulf %37, %33 : vector<16x128xf32>
    %39 = arith.select %36, %33, %38 : vector<16x128xi1>, vector<16x128xf32>
    %c1 = arith.constant 1 : index
    %c0_17 = arith.constant 0 : index
    %c0_18 = arith.constant 0 : index
    %40 = vector.load %arg1[%c1, %c0_17, %c0_18] : memref<3x128x128xf32, #tpu.memory_space<vmem>>, vector<1x128x128xf32>
    %41 = vector.shape_cast %40 : vector<1x128x128xf32> to vector<128x128xf32>
    %cst_19 = arith.constant dense<0.000000e+00> : vector<16x128xf32>
    %42 = tpu.matmul %39, %41, %cst_19 {dimension_numbers = #tpu.dot_dimension_numbers<[1], [0], [0], [1], [0, 0, 1, 1], [], []>} : vector<16x128xf32>, vector<128x128xf32>, vector<16x128xf32> -> vector<16x128xf32>
    %cst_20 = arith.constant dense<0.000000e+00> : vector<8x128xf32>
    %43 = tpu.matmul %5, %42, %cst_20 {dimension_numbers = #tpu.dot_dimension_numbers<[1], [0], [0], [1], [0, 0, 1, 1], [], []>} : vector<8x16xf32>, vector<16x128xf32>, vector<8x128xf32> -> vector<8x128xf32>
    %44 = vector.extract_strided_slice %43 {offsets = [0, 0], sizes = [1, 128], strides = [1, 1]} : vector<8x128xf32> to vector<1x128xf32>
    %cst_21 = arith.constant 1.250000e-01 : f32
    %45 = vector.broadcast %cst_21 : f32 to vector<1x128xf32>
    %46 = arith.mulf %44, %45 : vector<1x128xf32>
    %47 = vector.broadcast %46 : vector<1x128xf32> to vector<16x128xf32>
    %48 = arith.subf %42, %47 : vector<16x128xf32>
    %49 = arith.mulf %48, %48 : vector<16x128xf32>
    %cst_22 = arith.constant dense<0.000000e+00> : vector<8x128xf32>
    %50 = tpu.matmul %5, %49, %cst_22 {dimension_numbers = #tpu.dot_dimension_numbers<[1], [0], [0], [1], [0, 0, 1, 1], [], []>} : vector<8x16xf32>, vector<16x128xf32>, vector<8x128xf32> -> vector<8x128xf32>
    %51 = vector.extract_strided_slice %50 {offsets = [0, 0], sizes = [1, 128], strides = [1, 1]} : vector<8x128xf32> to vector<1x128xf32>
    %cst_23 = arith.constant 1.250000e-01 : f32
    %52 = vector.broadcast %cst_23 : f32 to vector<1x128xf32>
    %53 = arith.mulf %51, %52 : vector<1x128xf32>
    %c1_24 = arith.constant 1 : index
    %c0_25 = arith.constant 0 : index
    %c0_26 = arith.constant 0 : index
    %54 = vector.load %arg2[%c1_24, %c0_25, %c0_26] : memref<3x1x128xf32, #tpu.memory_space<vmem>>, vector<1x1x128xf32>
    %55 = vector.shape_cast %54 : vector<1x1x128xf32> to vector<1x128xf32>
    %cst_27 = arith.constant 9.99999974E-6 : f32
    %56 = vector.broadcast %cst_27 : f32 to vector<1x128xf32>
    %57 = arith.addf %53, %56 : vector<1x128xf32>
    %58 = math.rsqrt %57 : vector<1x128xf32>
    %59 = arith.mulf %55, %58 : vector<1x128xf32>
    %c1_28 = arith.constant 1 : index
    %c0_29 = arith.constant 0 : index
    %c0_30 = arith.constant 0 : index
    %60 = vector.load %arg3[%c1_28, %c0_29, %c0_30] : memref<3x1x128xf32, #tpu.memory_space<vmem>>, vector<1x1x128xf32>
    %61 = vector.shape_cast %60 : vector<1x1x128xf32> to vector<1x128xf32>
    %62 = arith.mulf %46, %59 : vector<1x128xf32>
    %63 = arith.subf %61, %62 : vector<1x128xf32>
    %64 = vector.broadcast %59 : vector<1x128xf32> to vector<16x128xf32>
    %65 = arith.mulf %42, %64 : vector<16x128xf32>
    %66 = vector.broadcast %63 : vector<1x128xf32> to vector<16x128xf32>
    %67 = arith.addf %65, %66 : vector<16x128xf32>
    %c1_31 = arith.constant 1 : index
    %68 = memref.load %arg4[%c1_31] : memref<3xf32, #tpu.memory_space<smem>>
    %cst_32 = arith.constant 0.000000e+00 : f32
    %69 = vector.broadcast %cst_32 : f32 to vector<16x128xf32>
    %70 = arith.cmpf oge, %67, %69 : vector<16x128xf32>
    %71 = vector.broadcast %68 : f32 to vector<16x128xf32>
    %72 = arith.mulf %71, %67 : vector<16x128xf32>
    %73 = arith.select %70, %67, %72 : vector<16x128xi1>, vector<16x128xf32>
    %c2 = arith.constant 2 : index
    %c0_33 = arith.constant 0 : index
    %c0_34 = arith.constant 0 : index
    %74 = vector.load %arg1[%c2, %c0_33, %c0_34] : memref<3x128x128xf32, #tpu.memory_space<vmem>>, vector<1x128x128xf32>
    %75 = vector.shape_cast %74 : vector<1x128x128xf32> to vector<128x128xf32>
    %cst_35 = arith.constant dense<0.000000e+00> : vector<16x128xf32>
    %76 = tpu.matmul %73, %75, %cst_35 {dimension_numbers = #tpu.dot_dimension_numbers<[1], [0], [0], [1], [0, 0, 1, 1], [], []>} : vector<16x128xf32>, vector<128x128xf32>, vector<16x128xf32> -> vector<16x128xf32>
    %cst_36 = arith.constant dense<0.000000e+00> : vector<8x128xf32>
    %77 = tpu.matmul %5, %76, %cst_36 {dimension_numbers = #tpu.dot_dimension_numbers<[1], [0], [0], [1], [0, 0, 1, 1], [], []>} : vector<8x16xf32>, vector<16x128xf32>, vector<8x128xf32> -> vector<8x128xf32>
    %78 = vector.extract_strided_slice %77 {offsets = [0, 0], sizes = [1, 128], strides = [1, 1]} : vector<8x128xf32> to vector<1x128xf32>
    %cst_37 = arith.constant 1.250000e-01 : f32
    %79 = vector.broadcast %cst_37 : f32 to vector<1x128xf32>
    %80 = arith.mulf %78, %79 : vector<1x128xf32>
    %81 = vector.broadcast %80 : vector<1x128xf32> to vector<16x128xf32>
    %82 = arith.subf %76, %81 : vector<16x128xf32>
    %83 = arith.mulf %82, %82 : vector<16x128xf32>
    %cst_38 = arith.constant dense<0.000000e+00> : vector<8x128xf32>
    %84 = tpu.matmul %5, %83, %cst_38 {dimension_numbers = #tpu.dot_dimension_numbers<[1], [0], [0], [1], [0, 0, 1, 1], [], []>} : vector<8x16xf32>, vector<16x128xf32>, vector<8x128xf32> -> vector<8x128xf32>
    %85 = vector.extract_strided_slice %84 {offsets = [0, 0], sizes = [1, 128], strides = [1, 1]} : vector<8x128xf32> to vector<1x128xf32>
    %cst_39 = arith.constant 1.250000e-01 : f32
    %86 = vector.broadcast %cst_39 : f32 to vector<1x128xf32>
    %87 = arith.mulf %85, %86 : vector<1x128xf32>
    %c2_40 = arith.constant 2 : index
    %c0_41 = arith.constant 0 : index
    %c0_42 = arith.constant 0 : index
    %88 = vector.load %arg2[%c2_40, %c0_41, %c0_42] : memref<3x1x128xf32, #tpu.memory_space<vmem>>, vector<1x1x128xf32>
    %89 = vector.shape_cast %88 : vector<1x1x128xf32> to vector<1x128xf32>
    %cst_43 = arith.constant 9.99999974E-6 : f32
    %90 = vector.broadcast %cst_43 : f32 to vector<1x128xf32>
    %91 = arith.addf %87, %90 : vector<1x128xf32>
    %92 = math.rsqrt %91 : vector<1x128xf32>
    %93 = arith.mulf %89, %92 : vector<1x128xf32>
    %c2_44 = arith.constant 2 : index
    %c0_45 = arith.constant 0 : index
    %c0_46 = arith.constant 0 : index
    %94 = vector.load %arg3[%c2_44, %c0_45, %c0_46] : memref<3x1x128xf32, #tpu.memory_space<vmem>>, vector<1x1x128xf32>
    %95 = vector.shape_cast %94 : vector<1x1x128xf32> to vector<1x128xf32>
    %96 = arith.mulf %80, %93 : vector<1x128xf32>
    %97 = arith.subf %95, %96 : vector<1x128xf32>
    %98 = vector.broadcast %93 : vector<1x128xf32> to vector<16x128xf32>
    %99 = arith.mulf %76, %98 : vector<16x128xf32>
    %100 = vector.broadcast %97 : vector<1x128xf32> to vector<16x128xf32>
    %101 = arith.addf %99, %100 : vector<16x128xf32>
    %c2_47 = arith.constant 2 : index
    %102 = memref.load %arg4[%c2_47] : memref<3xf32, #tpu.memory_space<smem>>
    %cst_48 = arith.constant 0.000000e+00 : f32
    %103 = vector.broadcast %cst_48 : f32 to vector<16x128xf32>
    %104 = arith.cmpf oge, %101, %103 : vector<16x128xf32>
    %105 = vector.broadcast %102 : f32 to vector<16x128xf32>
    %106 = arith.mulf %105, %101 : vector<16x128xf32>
    %107 = arith.select %104, %101, %106 : vector<16x128xi1>, vector<16x128xf32>
    %108 = arith.addf %107, %0 : vector<16x128xf32>
    %c0_49 = arith.constant 0 : index
    %c0_50 = arith.constant 0 : index
    %109 = vector.load %arg5[%c0_49, %c0_50] : memref<16x128xf32, #tpu.memory_space<vmem>>, vector<16x128xf32>
    tpu.vector_store %arg5[%c0_49, %c0_50], %108 {strides = array<i32>} : memref<16x128xf32, #tpu.memory_space<vmem>>, vector<16x128xf32>,
    return
  }
}

</mosaic_0001>

<llo_original>
// kernel: residual_nn.1
$region0: #{residual_nn.1}
  #allocation0 [shape = 'u32[]', space=smem, size = 0x4, offset = 0x4, fixed_abs, tag = 'smem constant byte address 0x4 - core index']
  #allocation1 [shape = 'u32[72,128]{1,0:T(1,128)}', space=vmem, size = 0x9000, scoped, tag = 'internal scratch']
  %s0 = inlined_call_operand.vmem [shape: f32[16,128], index: 0, kind: input, shape index: {}]
  %s1 = inlined_call_operand.vmem [shape: f32[3,128,128], index: 1, kind: input, shape index: {}]
  %s2 = inlined_call_operand.vmem [shape: f32[3,1,128], index: 2, kind: input, shape index: {}]
  %s3 = inlined_call_operand.vmem [shape: f32[3,1,128], index: 3, kind: input, shape index: {}]
  %s4 = inlined_call_operand.vmem [shape: f32[3], index: 4, kind: input, shape index: {}]
  %s5 = inlined_call_operand.vmem [shape: f32[16,128], index: 5, kind: output, shape index: {}]
  %s6 = sld [smem:[#allocation0]]
  $region34: #{residual_nn.1} parent=0
    _
  %s8 = ssub.s32 1, %s6
  %s9 = scalar_select 0, %s8, %s6
  $region1: #{residual_nn.1} parent=0
    #allocation2 [shape = 'u8[512]{0}', space=smem, size = 0x200, scoped, tag = 'input window, operand 4, single buffered']
    #allocation3 [shape = 's32[1]{0}', space=sflag, size = 0x4, scoped, tag = 'scoped memory for residual_nn.1']
    %10 = vsyncpa [#allocation3], 0
    // Predicated region
    $region2: #{residual_nn.1} parent=1 // pred_check
      _
    $region3: #{residual_nn.1} parent=1 // pred_check_branch
      %12 = sbr.rel (0) target = $region5
    $region4: #{residual_nn.1} parent=1 // pred_region
      _
    $region5: #{residual_nn.1} parent=1 // pred_fallthru
      _
    // Predicated region
    $region6: #{residual_nn.1} parent=1 // pred_check
      _
    $region7: #{residual_nn.1} parent=1 // pred_check_branch
      %14 = sbr.rel (0) target = $region9
    $region8: #{residual_nn.1} parent=1 // pred_region
      _
    $region9: #{residual_nn.1} parent=1 // pred_fallthru
      _
    // Predicated region
    $region10: #{residual_nn.1} parent=1 // pred_check
      _
    $region11: #{residual_nn.1} parent=1 // pred_check_branch
      %16 = sbr.rel (0) target = $region13
    $region12: #{residual_nn.1} parent=1 // pred_region
      _
    $region13: #{residual_nn.1} parent=1 // pred_fallthru
      _
    // Predicated region
    $region14: #{residual_nn.1} parent=1 // pred_check
      _
    $region15: #{residual_nn.1} parent=1 // pred_check_branch
      %18 = sbr.rel (0) target = $region17
    $region16: #{residual_nn.1} parent=1 // pred_region
      _
    $region17: #{residual_nn.1} parent=1 // pred_fallthru
      _
    // Predicated region
    $region18: #{residual_nn.1} parent=1 // pred_check
      _
    $region19: #{residual_nn.1} parent=1 // pred_check_branch
      %20 = sbr.rel (0) target = $region21
    $region20: #{residual_nn.1} parent=1 // pred_region
      %22 = vsyncadd [#allocation3], 0
      %s24 = sshll.u32 %s4, 4
      %s25 = int_to_ptr.vmem [resolvable:$true] %s24
      %27 = dma.vmem_to_smem %s25, 16, [#allocation2], [#allocation3]
    $region21: #{residual_nn.1} parent=1 // pred_fallthru
      _
    // Predicated region
    $region22: #{residual_nn.1} parent=1 // pred_check
      _
    $region23: #{residual_nn.1} parent=1 // pred_check_branch
      %29 = sbr.rel (0) target = $region25
    $region24: #{residual_nn.1} parent=1 // pred_region
      %31 = dma.done [#allocation3], 16
    $region25: #{residual_nn.1} parent=1 // pred_fallthru
      _
    %32 = sfence
    %v33 = vld [vmem:[%s0] sm:$0xff]
    %v34 = vld [vmem:[%s0 + $0x8] sm:$0xff]
    %v35 = vlaneseq
    %v36 = vand.u32 %v35, 127
    %vm37 = vcmp.lt.s32.totalorder %v36, 8
    %v38 = vsel %vm37, 1, 0
    %v39 = vcvt.s32.f32 %v38
    %v40 = vld [vmem:[%s1] sm:$0xff]
    %v41 = vld [vmem:[%s1 + $0x8] sm:$0xff]
    %v42 = vld [vmem:[%s1 + $0x10] sm:$0xff]
    %v43 = vld [vmem:[%s1 + $0x18] sm:$0xff]
    %v44 = vld [vmem:[%s1 + $0x20] sm:$0xff]
    %v45 = vld [vmem:[%s1 + $0x28] sm:$0xff]
    %v46 = vld [vmem:[%s1 + $0x30] sm:$0xff]
    %v47 = vld [vmem:[%s1 + $0x38] sm:$0xff]
    %v48 = vld [vmem:[%s1 + $0x40] sm:$0xff]
    %v49 = vld [vmem:[%s1 + $0x48] sm:$0xff]
    %v50 = vld [vmem:[%s1 + $0x50] sm:$0xff]
    %v51 = vld [vmem:[%s1 + $0x58] sm:$0xff]
    %v52 = vld [vmem:[%s1 + $0x60] sm:$0xff]
    %v53 = vld [vmem:[%s1 + $0x68] sm:$0xff]
    %v54 = vld [vmem:[%s1 + $0x70] sm:$0xff]
    %v55 = vld [vmem:[%s1 + $0x78] sm:$0xff]
    %56 = vmatpush.msra.mxu0 %v55
    %57 = vmatpush.msra.mxu0 %v54
    %58 = vmatpush.msra.mxu0 %v53
    %59 = vmatpush.msra.mxu0 %v52
    %60 = vmatpush.msra.mxu0 %v51
    %61 = vmatpush.msra.mxu0 %v50
    %62 = vmatpush.msra.mxu0 %v49
    %63 = vmatpush.msra.mxu0 %v48
    %64 = vmatpush.msra.mxu0 %v47
    %65 = vmatpush.msra.mxu0 %v46
    %66 = vmatpush.msra.mxu0 %v45
    %67 = vmatpush.msra.mxu0 %v44
    %68 = vmatpush.msra.mxu0 %v43
    %69 = vmatpush.msra.mxu0 %v42
    %70 = vmatpush.msra.mxu0 %v41
    %71 = vmatpush.msra.mxu0 %v40
    %72 = vmatmul.f32.gmra.mxu0 %v33
    %v73 = vpop.f32.mrf.mxu0
    %v74 = vadd.f32 0.0, %v73
    %75 = vmatmul.f32.gmra.mxu0 %v34
    %v76 = vpop.f32.mrf.mxu0
    %v77 = vadd.f32 0.0, %v76
    %78 = vdwg.mxu0
    %vm79 = vcmask 130048
    %v81 = vsel %vm79, %v39, 0
    %83 = vmatpush.msra.mxu0 0.0
    %84 = vmatpush.msra.mxu0 0.0
    %85 = vmatpush.msra.mxu0 0.0
    %86 = vmatpush.msra.mxu0 0.0
    %87 = vmatpush.msra.mxu0 0.0
    %88 = vmatpush.msra.mxu0 0.0
    %89 = vmatpush.msra.mxu0 0.0
    %90 = vmatpush.msra.mxu0 0.0
    %91 = vmatpush.msra.mxu0 0.0
    %92 = vmatpush.msra.mxu0 0.0
    %93 = vmatpush.msra.mxu0 0.0
    %94 = vmatpush.msra.mxu0 0.0
    %95 = vmatpush.msra.mxu0 0.0
    %96 = vmatpush.msra.mxu0 0.0
    %97 = vmatpush.msra.mxu0 %v77
    %98 = vmatpush.msra.mxu0 %v74
    %99 = vmatmul.f32.gmra.mxu0 %v81
    %v100 = vpop.f32.mrf.mxu0
    %v101 = vadd.f32 0.0, %v100
    %102 = vdwg.mxu0
    %v103 = vmul.f32 %v101, 0.125
    %v104 = vperm.slane %v103, 0
    %v105 = vsub.f32 %v74, %v104
    %v106 = vsub.f32 %v77, %v104
    %v107 = vmul.f32 %v105, %v105
    %v108 = vmul.f32 %v106, %v106
    %109 = vmatpush.msra.mxu0 0.0
    %110 = vmatpush.msra.mxu0 0.0
    %111 = vmatpush.msra.mxu0 0.0
    %112 = vmatpush.msra.mxu0 0.0
    %113 = vmatpush.msra.mxu0 0.0
    %114 = vmatpush.msra.mxu0 0.0
    %115 = vmatpush.msra.mxu0 0.0
    %116 = vmatpush.msra.mxu0 0.0
    %117 = vmatpush.msra.mxu0 0.0
    %118 = vmatpush.msra.mxu0 0.0
    %119 = vmatpush.msra.mxu0 0.0
    %120 = vmatpush.msra.mxu0 0.0
    %121 = vmatpush.msra.mxu0 0.0
    %122 = vmatpush.msra.mxu0 0.0
    %123 = vmatpush.msra.mxu0 %v108
    %124 = vmatpush.msra.mxu0 %v107
    %125 = vmatmul.f32.gmra.mxu0 %v81
    %v126 = vpop.f32.mrf.mxu0
    %v127 = vadd.f32 0.0, %v126
    %128 = vdwg.mxu0
    %v129 = vmul.f32 %v127, 0.125
    %v130 = vld [vmem:[%s2] sm:$0x1]
    %v131 = vadd.f32 %v129, 1e-05
    %v132 = vrsqrt.pop %v131
    %v133 = vmul.f32 %v132, %v131
    %v134 = vmul.f32 %v133, %v132
    %v135 = vmul.f32 0.5, %v134
    %v136 = vsub.f32 1.5, %v135
    %v137 = vmul.f32 %v132, %v136
    %vm138 = vweird.f32 %v131
    %vm139 = vweird.f32 %v132
    %vm140 = vmor %vm138, %vm139
    %v141 = vsel %vm140, %v132, %v137
    %v142 = vmul.f32 %v130, %v141
    %v143 = vld [vmem:[%s3] sm:$0x1]
    %v144 = vmul.f32 %v103, %v142
    %v145 = vsub.f32 %v143, %v144
    %v147 = vperm.slane %v142, 0
    %v149 = vmul.f32 %v74, %v147
    %v150 = vmul.f32 %v77, %v147
    %v152 = vperm.slane %v145, 0
    %v154 = vadd.f32 %v149, %v152
    %v155 = vadd.f32 %v150, %v152
    %s156 = sld [smem:[#allocation2]]
    %vm157 = vcmp.ge.f32.partialorder %v154, 0.0
    %vm158 = vcmp.ge.f32.partialorder %v155, 0.0
    %v159 = vstv %s156
    %v160 = vmul.f32 %v159, %v154
    %v161 = vmul.f32 %v159, %v155
    %v162 = vsel %vm157, %v154, %v160
    %v163 = vsel %vm158, %v155, %v161
    %s164 = scalar_lea.vmem %s1, 128
    %v165 = vld [vmem:[%s164] sm:$0xff]
    %v166 = vld [vmem:[%s164 + $0x8] sm:$0xff]
    %v167 = vld [vmem:[%s164 + $0x10] sm:$0xff]
    %v168 = vld [vmem:[%s164 + $0x18] sm:$0xff]
    %v169 = vld [vmem:[%s164 + $0x20] sm:$0xff]
    %v170 = vld [vmem:[%s164 + $0x28] sm:$0xff]
    %v171 = vld [vmem:[%s164 + $0x30] sm:$0xff]
    %v172 = vld [vmem:[%s164 + $0x38] sm:$0xff]
    %v173 = vld [vmem:[%s164 + $0x40] sm:$0xff]
    %v174 = vld [vmem:[%s164 + $0x48] sm:$0xff]
    %v175 = vld [vmem:[%s164 + $0x50] sm:$0xff]
    %v176 = vld [vmem:[%s164 + $0x58] sm:$0xff]
    %v177 = vld [vmem:[%s164 + $0x60] sm:$0xff]
    %v178 = vld [vmem:[%s164 + $0x68] sm:$0xff]
    %v179 = vld [vmem:[%s164 + $0x70] sm:$0xff]
    %v180 = vld [vmem:[%s164 + $0x78] sm:$0xff]
    %181 = vmatpush.msra.mxu0 %v180
    %182 = vmatpush.msra.mxu0 %v179
    %183 = vmatpush.msra.mxu0 %v178
    %184 = vmatpush.msra.mxu0 %v177
    %185 = vmatpush.msra.mxu0 %v176
    %186 = vmatpush.msra.mxu0 %v175
    %187 = vmatpush.msra.mxu0 %v174
    %188 = vmatpush.msra.mxu0 %v173
    %189 = vmatpush.msra.mxu0 %v172
    %190 = vmatpush.msra.mxu0 %v171
    %191 = vmatpush.msra.mxu0 %v170
    %192 = vmatpush.msra.mxu0 %v169
    %193 = vmatpush.msra.mxu0 %v168
    %194 = vmatpush.msra.mxu0 %v167
    %195 = vmatpush.msra.mxu0 %v166
    %196 = vmatpush.msra.mxu0 %v165
    %197 = vmatmul.f32.gmra.mxu0 %v162
    %v198 = vpop.f32.mrf.mxu0
    %v199 = vadd.f32 0.0, %v198
    %200 = vmatmul.f32.gmra.mxu0 %v163
    %v201 = vpop.f32.mrf.mxu0
    %v202 = vadd.f32 0.0, %v201
    %203 = vdwg.mxu0
    %204 = vmatpush.msra.mxu0 0.0
    %205 = vmatpush.msra.mxu0 0.0
    %206 = vmatpush.msra.mxu0 0.0
    %207 = vmatpush.msra.mxu0 0.0
    %208 = vmatpush.msra.mxu0 0.0
    %209 = vmatpush.msra.mxu0 0.0
    %210 = vmatpush.msra.mxu0 0.0
    %211 = vmatpush.msra.mxu0 0.0
    %212 = vmatpush.msra.mxu0 0.0
    %213 = vmatpush.msra.mxu0 0.0
    %214 = vmatpush.msra.mxu0 0.0
    %215 = vmatpush.msra.mxu0 0.0
    %216 = vmatpush.msra.mxu0 0.0
    %217 = vmatpush.msra.mxu0 0.0
    %218 = vmatpush.msra.mxu0 %v202
    %219 = vmatpush.msra.mxu0 %v199
    %220 = vmatmul.f32.gmra.mxu0 %v81
    %v221 = vpop.f32.mrf.mxu0
    %v222 = vadd.f32 0.0, %v221
    %223 = vdwg.mxu0
    %v224 = vmul.f32 %v222, 0.125
    %v225 = vperm.slane %v224, 0
    %v226 = vsub.f32 %v199, %v225
    %v227 = vsub.f32 %v202, %v225
    %v228 = vmul.f32 %v226, %v226
    %v229 = vmul.f32 %v227, %v227
    %230 = vmatpush.msra.mxu0 0.0
    %231 = vmatpush.msra.mxu0 0.0
    %232 = vmatpush.msra.mxu0 0.0
    %233 = vmatpush.msra.mxu0 0.0
    %234 = vmatpush.msra.mxu0 0.0
    %235 = vmatpush.msra.mxu0 0.0
    %236 = vmatpush.msra.mxu0 0.0
    %237 = vmatpush.msra.mxu0 0.0
    %238 = vmatpush.msra.mxu0 0.0
    %239 = vmatpush.msra.mxu0 0.0
    %240 = vmatpush.msra.mxu0 0.0
    %241 = vmatpush.msra.mxu0 0.0
    %242 = vmatpush.msra.mxu0 0.0
    %243 = vmatpush.msra.mxu0 0.0
    %244 = vmatpush.msra.mxu0 %v229
    %245 = vmatpush.msra.mxu0 %v228
    %246 = vmatmul.f32.gmra.mxu0 %v81
    %v247 = vpop.f32.mrf.mxu0
    %v248 = vadd.f32 0.0, %v247
    %249 = vdwg.mxu0
    %v250 = vmul.f32 %v248, 0.125
    %s251 = scalar_lea.vmem %s2, 1
    %v252 = vld [vmem:[%s251] sm:$0x1]
    %v253 = vadd.f32 %v250, 1e-05
    %v254 = vrsqrt.pop %v253
    %v255 = vmul.f32 %v254, %v253
    %v256 = vmul.f32 %v255, %v254
    %v257 = vmul.f32 0.5, %v256
    %v258 = vsub.f32 1.5, %v257
    %v259 = vmul.f32 %v254, %v258
    %vm260 = vweird.f32 %v253
    %vm261 = vweird.f32 %v254
    %vm262 = vmor %vm260, %vm261
    %v263 = vsel %vm262, %v254, %v259
    %v264 = vmul.f32 %v252, %v263
    %s265 = scalar_lea.vmem %s3, 1
    %v266 = vld [vmem:[%s265] sm:$0x1]
    %v267 = vmul.f32 %v224, %v264
    %v268 = vsub.f32 %v266, %v267
    %v270 = vperm.slane %v264, 0
    %v272 = vmul.f32 %v199, %v270
    %v273 = vmul.f32 %v202, %v270
    %v275 = vperm.slane %v268, 0
    %v277 = vadd.f32 %v272, %v275
    %v278 = vadd.f32 %v273, %v275
    %s279 = sld [smem:[#allocation2 + $0x1]]
    %vm280 = vcmp.ge.f32.partialorder %v277, 0.0
    %vm281 = vcmp.ge.f32.partialorder %v278, 0.0
    %v282 = vstv %s279
    %v283 = vmul.f32 %v282, %v277
    %v284 = vmul.f32 %v282, %v278
    %v285 = vsel %vm280, %v277, %v283
    %v286 = vsel %vm281, %v278, %v284
    %s287 = scalar_lea.vmem %s1, 256
    %v288 = vld [vmem:[%s287] sm:$0xff]
    %v289 = vld [vmem:[%s287 + $0x8] sm:$0xff]
    %v290 = vld [vmem:[%s287 + $0x10] sm:$0xff]
    %v291 = vld [vmem:[%s287 + $0x18] sm:$0xff]
    %v292 = vld [vmem:[%s287 + $0x20] sm:$0xff]
    %v293 = vld [vmem:[%s287 + $0x28] sm:$0xff]
    %v294 = vld [vmem:[%s287 + $0x30] sm:$0xff]
    %v295 = vld [vmem:[%s287 + $0x38] sm:$0xff]
    %v296 = vld [vmem:[%s287 + $0x40] sm:$0xff]
    %v297 = vld [vmem:[%s287 + $0x48] sm:$0xff]
    %v298 = vld [vmem:[%s287 + $0x50] sm:$0xff]
    %v299 = vld [vmem:[%s287 + $0x58] sm:$0xff]
    %v300 = vld [vmem:[%s287 + $0x60] sm:$0xff]
    %v301 = vld [vmem:[%s287 + $0x68] sm:$0xff]
    %v302 = vld [vmem:[%s287 + $0x70] sm:$0xff]
    %v303 = vld [vmem:[%s287 + $0x78] sm:$0xff]
    %304 = vmatpush.msra.mxu0 %v303
    %305 = vmatpush.msra.mxu0 %v302
    %306 = vmatpush.msra.mxu0 %v301
    %307 = vmatpush.msra.mxu0 %v300
    %308 = vmatpush.msra.mxu0 %v299
    %309 = vmatpush.msra.mxu0 %v298
    %310 = vmatpush.msra.mxu0 %v297
    %311 = vmatpush.msra.mxu0 %v296
    %312 = vmatpush.msra.mxu0 %v295
    %313 = vmatpush.msra.mxu0 %v294
    %314 = vmatpush.msra.mxu0 %v293
    %315 = vmatpush.msra.mxu0 %v292
    %316 = vmatpush.msra.mxu0 %v291
    %317 = vmatpush.msra.mxu0 %v290
    %318 = vmatpush.msra.mxu0 %v289
    %319 = vmatpush.msra.mxu0 %v288
    %320 = vmatmul.f32.gmra.mxu0 %v285
    %v321 = vpop.f32.mrf.mxu0
    %v322 = vadd.f32 0.0, %v321
    %323 = vmatmul.f32.gmra.mxu0 %v286
    %v324 = vpop.f32.mrf.mxu0
    %v325 = vadd.f32 0.0, %v324
    %326 = vdwg.mxu0
    %327 = vmatpush.msra.mxu0 0.0
    %328 = vmatpush.msra.mxu0 0.0
    %329 = vmatpush.msra.mxu0 0.0
    %330 = vmatpush.msra.mxu0 0.0
    %331 = vmatpush.msra.mxu0 0.0
    %332 = vmatpush.msra.mxu0 0.0
    %333 = vmatpush.msra.mxu0 0.0
    %334 = vmatpush.msra.mxu0 0.0
    %335 = vmatpush.msra.mxu0 0.0
    %336 = vmatpush.msra.mxu0 0.0
    %337 = vmatpush.msra.mxu0 0.0
    %338 = vmatpush.msra.mxu0 0.0
    %339 = vmatpush.msra.mxu0 0.0
    %340 = vmatpush.msra.mxu0 0.0
    %341 = vmatpush.msra.mxu0 %v325
    %342 = vmatpush.msra.mxu0 %v322
    %343 = vmatmul.f32.gmra.mxu0 %v81
    %v344 = vpop.f32.mrf.mxu0
    %v345 = vadd.f32 0.0, %v344
    %346 = vdwg.mxu0
    %v347 = vmul.f32 %v345, 0.125
    %v348 = vperm.slane %v347, 0
    %v349 = vsub.f32 %v322, %v348
    %v350 = vsub.f32 %v325, %v348
    %v351 = vmul.f32 %v349, %v349
    %v352 = vmul.f32 %v350, %v350
    %353 = vmatpush.msra.mxu0 0.0
    %354 = vmatpush.msra.mxu0 0.0
    %355 = vmatpush.msra.mxu0 0.0
    %356 = vmatpush.msra.mxu0 0.0
    %357 = vmatpush.msra.mxu0 0.0
    %358 = vmatpush.msra.mxu0 0.0
    %359 = vmatpush.msra.mxu0 0.0
    %360 = vmatpush.msra.mxu0 0.0
    %361 = vmatpush.msra.mxu0 0.0
    %362 = vmatpush.msra.mxu0 0.0
    %363 = vmatpush.msra.mxu0 0.0
    %364 = vmatpush.msra.mxu0 0.0
    %365 = vmatpush.msra.mxu0 0.0
    %366 = vmatpush.msra.mxu0 0.0
    %367 = vmatpush.msra.mxu0 %v352
    %368 = vmatpush.msra.mxu0 %v351
    %369 = vmatmul.f32.gmra.mxu0 %v81
    %v370 = vpop.f32.mrf.mxu0
    %v371 = vadd.f32 0.0, %v370
    %372 = vdwg.mxu0
    %v373 = vmul.f32 %v371, 0.125
    %s374 = scalar_lea.vmem %s2, 2
    %v375 = vld [vmem:[%s374] sm:$0x1]
    %v376 = vadd.f32 %v373, 1e-05
    %v377 = vrsqrt.pop %v376
    %v378 = vmul.f32 %v377, %v376
    %v379 = vmul.f32 %v378, %v377
    %v380 = vmul.f32 0.5, %v379
    %v381 = vsub.f32 1.5, %v380
    %v382 = vmul.f32 %v377, %v381
    %vm383 = vweird.f32 %v376
    %vm384 = vweird.f32 %v377
    %vm385 = vmor %vm383, %vm384
    %v386 = vsel %vm385, %v377, %v382
    %v387 = vmul.f32 %v375, %v386
    %s388 = scalar_lea.vmem %s3, 2
    %v389 = vld [vmem:[%s388] sm:$0x1]
    %v390 = vmul.f32 %v347, %v387
    %v391 = vsub.f32 %v389, %v390
    %v393 = vperm.slane %v387, 0
    %v395 = vmul.f32 %v322, %v393
    %v396 = vmul.f32 %v325, %v393
    %v398 = vperm.slane %v391, 0
    %v400 = vadd.f32 %v395, %v398
    %v401 = vadd.f32 %v396, %v398
    %s402 = sld [smem:[#allocation2 + $0x2]]
    %vm403 = vcmp.ge.f32.partialorder %v400, 0.0
    %vm404 = vcmp.ge.f32.partialorder %v401, 0.0
    %v405 = vstv %s402
    %v406 = vmul.f32 %v405, %v400
    %v407 = vmul.f32 %v405, %v401
    %v408 = vsel %vm403, %v400, %v406
    %v409 = vsel %vm404, %v401, %v407
    %v410 = vadd.f32 %v408, %v33
    %v411 = vadd.f32 %v409, %v34
    %412 = vst [vmem:[%s5] sm:$0xff] %v410
    %413 = vst [vmem:[%s5 + $0x8] sm:$0xff] %v411
    // Predicated region
    $region26: #{residual_nn.1} parent=1 // pred_check
      _
    $region27: #{residual_nn.1} parent=1 // pred_check_branch
      %415 = sbr.rel (0) target = $region29
    $region28: #{residual_nn.1} parent=1 // pred_region
      _
    $region29: #{residual_nn.1} parent=1 // pred_fallthru
      _
    // Predicated region
    $region30: #{residual_nn.1} parent=1 // pred_check
      _
    $region31: #{residual_nn.1} parent=1 // pred_check_branch
      %417 = sbr.rel (0) target = $region33
    $region32: #{residual_nn.1} parent=1 // pred_region
      _
    $region33: #{residual_nn.1} parent=1 // pred_fallthru
      _
    %418 = vsyncpa [#allocation3], 1

</llo_original>
